<compile_context>
chip_gen: v6e
topology: v6e:2x2x1
jax: 0.10.0
libtpu: 0.0.40
codegen_flags: <defaults>
</compile_context>

<pallas_src>
import functools

import jax
import jax.numpy as jnp
from jax.experimental import pallas as pl
from jax.experimental.pallas import tpu as pltpu

_LANE = 128
_SUBLANE = 8


def _round_up(v, m):
    return ((v + m - 1) // m) * m


def _global_sa_kernel(x_ref, pos_ref, batch_ref,
                      w1x_ref, w1p_ref, b1_ref, w2_ref, b2_ref,
                      out_ref, *, num_batches, n_points, tiles_per_core,
                      tiles_total, compute_dtype):
    tile_n = x_ref.shape[0]
    b_pad, out_p = out_ref.shape

    # Per-core running-max accumulator (resident across grid axis 1): init once.
    @pl.when(pl.program_id(1) == 0)
    def _():
        out_ref[...] = jnp.full(out_ref.shape, -jnp.inf, out_ref.dtype)

    # ---- per-point shared MLP on the MXU (low-precision operands, f32 accumulation).
    # The concat([x, pos]) of the reference is fused as two partial matmuls against
    # the row-split W1 (no HBM concat, no in-VMEM lane concat).
    h = jnp.dot(x_ref[...].astype(compute_dtype), w1x_ref[...],
                preferred_element_type=jnp.float32)
    h = h + jnp.dot(pos_ref[...].astype(compute_dtype), w1p_ref[...],
                    preferred_element_type=jnp.float32)
    h = jnp.maximum(h + b1_ref[...], 0.0)
    y = jnp.dot(h.astype(compute_dtype), w2_ref[...],
                preferred_element_type=jnp.float32)
    y = jnp.maximum(y + b2_ref[...], 0.0)          # (TN, C_out_pad) f32, lane-dense

    # ---- ragged-tail mask. Inputs are NOT padded in the wrapper; any tile that
    # would fall past the end is clamped to the last tile by the index_map, and its
    # rows re-merge idempotently through the max below. Rows >= n_points are dropped.
    c = pl.program_id(0)
    i = pl.program_id(1)
    tile_idx = jnp.minimum(c * tiles_per_core + i, tiles_total - 1)
    row_ids = tile_idx * tile_n + jax.lax.broadcasted_iota(jnp.int32, (tile_n, 1), 0)
    valid = row_ids < n_points                      # (TN, 1) bool

    # ---- segment max-pool: build all per-batch tile maxima, merge them with a single
    # dense (B_pad, C_out_pad) store (sublane/lane aligned -> unmasked vst).
    bids = batch_ref[...]                           # (TN, 1) int32
    row_iota = jax.lax.broadcasted_iota(jnp.int32, (b_pad, out_p), 0)
    acc = out_ref[...]
    # TODO(synk): for large num_batches, switch to scalar-prefetched per-batch row
    # offsets (grid = (batch, tile_within_batch)) so each tile does one plain max
    # instead of num_batches masked passes.
    for b in range(num_batches):                    # small & static
        sel = jnp.logical_and(bids == b, valid)     # (TN, 1)
        m_b = jnp.max(jnp.where(sel, y, -jnp.inf), axis=0, keepdims=True)  # (1, Op)
        acc = jnp.where(row_iota == b, jnp.maximum(acc, m_b), acc)
    out_ref[...] = acc


def global_sa_module(x, pos, batch, params, *, num_batches,
                     tile_n=1024, core_split=1, use_bf16=True):
    """x: (N, F) f32, pos: (N, 3) f32, batch: (N,) int32 in [0, num_batches).

    params = (W1, b1, W2, b2) of the per-point MLP:
      Linear(F+3, H) -> ReLU -> Linear(H, O) -> ReLU.
    Returns (pooled (B, O), zeros (B, 3), arange(B)).
    Batches with zero points come out as -inf (same as a masked-max reference).
    """
    w1, b1, w2, b2 = params
    n, f = x.shape
    hid = w1.shape[1]
    c_out = w2.shape[1]
    assert w1.shape[0] == f + 3, "W1 must act on concat([x, pos])"

    compute_dtype = jnp.bfloat16 if use_bf16 else jnp.float32

    # --- pad the (tiny, one-time) parameter tensors to lane/sublane-friendly shapes.
    hid_p = _round_up(hid, _LANE)
    out_p = _round_up(c_out, _LANE)
    b_pad = _round_up(num_batches, _SUBLANE)        # sublane-dense accumulator rows

    w1x = jnp.pad(w1[:f, :], ((0, 0), (0, hid_p - hid))).astype(compute_dtype)
    w1p = jnp.pad(w1[f:, :], ((0, 0), (0, hid_p - hid))).astype(compute_dtype)
    b1p = jnp.pad(jnp.reshape(b1, (1, hid)).astype(jnp.float32),
                  ((0, 0), (0, hid_p - hid)))
    w2p = jnp.pad(w2, ((0, hid_p - hid), (0, out_p - c_out))).astype(compute_dtype)
    b2p = jnp.pad(jnp.reshape(b2, (1, c_out)).astype(jnp.float32),
                  ((0, 0), (0, out_p - c_out)))

    # --- point arrays go in as-is: no HBM round-trip from jnp.pad of the point cloud.
    x_in = x.astype(jnp.float32)
    pos_in = pos.astype(jnp.float32)
    batch_in = jnp.reshape(batch.astype(jnp.int32), (n, 1))

    # --- point-axis tiling. If n fits a single tile we use the exact full dim
    # (exempt from the /8 rule); otherwise a multiple-of-8 tile with a ragged tail
    # that the kernel masks by row index.
    tile_n_req = max(_SUBLANE, _round_up(tile_n, _SUBLANE))
    tile_n_eff = n if n <= tile_n_req else tile_n_req
    tiles_total = pl.cdiv(n, tile_n_eff)
    core_split = max(1, min(core_split, tiles_total))
    tiles_per_core = pl.cdiv(tiles_total, core_split)
    grid = (core_split, tiles_per_core)

    def pt_map(c, i):
        t = c * tiles_per_core + i
        return (jnp.minimum(t, tiles_total - 1), 0)

    # --- explicit VMEM budget: double-buffered input tiles + resident weights +
    # f32 intermediates + accumulator, kept under v7x's 64 MiB physical VMEM.
    wbytes = 2 if use_bf16 else 4
    est = (2 * tile_n_eff * (f + 3 + 1) * 4
           + 2 * ((f + 3) * hid_p + hid_p * out_p) * wbytes
           + 2 * (hid_p + out_p) * 4
           + tile_n_eff * hid_p * (4 + wbytes)
           + tile_n_eff * out_p * 4
           + 2 * b_pad * out_p * 4)
    vmem_limit = int(min(48 * 2**20, max(16 * 2**20, 2 * est)))

    out = pl.pallas_call(
        functools.partial(_global_sa_kernel,
                          num_batches=num_batches, n_points=n,
                          tiles_per_core=tiles_per_core, tiles_total=tiles_total,
                          compute_dtype=compute_dtype),
        out_shape=jax.ShapeDtypeStruct((core_split, b_pad, out_p), jnp.float32),
        grid_spec=pltpu.PrefetchScalarGridSpec(
            num_scalar_prefetch=0,
            grid=grid,
            in_specs=[
                pl.BlockSpec((tile_n_eff, f), pt_map),            # x point tile
                pl.BlockSpec((tile_n_eff, 3), pt_map),            # pos point tile
                pl.BlockSpec((tile_n_eff, 1), pt_map),            # batch ids
                pl.BlockSpec(w1x.shape, lambda c, i: (0, 0)),     # resident weights
                pl.BlockSpec(w1p.shape, lambda c, i: (0, 0)),
                pl.BlockSpec(b1p.shape, lambda c, i: (0, 0)),
                pl.BlockSpec(w2p.shape, lambda c, i: (0, 0)),
                pl.BlockSpec(b2p.shape, lambda c, i: (0, 0)),
            ],
            # Leading (core) axis squeezed: kernel sees a (B_pad, C_out_pad) block.
            out_specs=pl.BlockSpec((None, b_pad, out_p), lambda c, i: (c, 0, 0)),
        ),
        compiler_params=pltpu.CompilerParams(
            # axis 0: optional per-core partial maxima (v7x); axis 1: point-tile
            # reduction into the resident accumulator.
            dimension_semantics=("parallel", "arbitrary"),
            vmem_limit_bytes=vmem_limit,
        ),
    )(x_in, pos_in, batch_in, w1x, w1p, b1p, w2p, b2p)

    pooled = jnp.max(out, axis=0)[:num_batches, :c_out]   # merge cores, drop padding
    pos_out = jnp.zeros((num_batches, 3), dtype=pos.dtype)
    batch_out = jnp.arange(num_batches, dtype=jnp.int32)
    return pooled, pos_out, batch_out


def _reference(x, pos, batch, params, num_batches):
    w1, b1, w2, b2 = params
    xin = jnp.concatenate([x, pos], axis=1)
    h = jnp.maximum(xin @ w1 + b1, 0.0)
    y = jnp.maximum(h @ w2 + b2, 0.0)
    outs = []
    for b in range(num_batches):
        mask = (batch == b)[:, None]
        outs.append(jnp.max(jnp.where(mask, y, -jnp.inf), axis=0))
    return jnp.stack(outs, axis=0)


if __name__ == "__main__":
    key = jax.random.PRNGKey(0)
    N, F, HID, OUT, B = 64, 4, 16, 32, 2        # small shapes consistent with forward
    C_IN = F + 3

    k1, k2, k3, k4, k5, k6 = jax.random.split(key, 6)
    x = jax.random.normal(k1, (N, F), dtype=jnp.float32)
    pos = jax.random.normal(k2, (N, 3), dtype=jnp.float32)
    batch = jnp.repeat(jnp.arange(B, dtype=jnp.int32), N // B)   # each batch non-empty

    # Deterministic MLP params: nn = Linear(C_IN, HID) -> ReLU -> Linear(HID, OUT) -> ReLU
    w1 = jax.random.normal(k3, (C_IN, HID), dtype=jnp.float32) * 0.2
    b1 = jax.random.normal(k4, (1, HID), dtype=jnp.float32) * 0.1
    w2 = jax.random.normal(k5, (HID, OUT), dtype=jnp.float32) * 0.2
    b2 = jax.random.normal(k6, (1, OUT), dtype=jnp.float32) * 0.1
    params = (w1, b1, w2, b2)
    # TODO(synk): torch_geometric's MLP also inserts BatchNorm1d; fold BN into W/b
    # (inference mode) for exact parity — only Linear+ReLU stacks are modeled here.

    out_x, out_pos, out_batch = global_sa_module(
        x, pos, batch, params, num_batches=B)
    jax.block_until_ready((out_x, out_pos, out_batch))

    ref = _reference(x, pos, batch, params, B)
    assert out_x.shape == (B, OUT) and out_pos.shape == (B, 3) and out_batch.shape == (B,)
    # bf16 matmul operands (f32 accumulation) -> loosened tolerance vs. f32 reference.
    assert jnp.allclose(out_x, ref, atol=5e-2, rtol=5e-2), \
        float(jnp.max(jnp.abs(out_x - ref)))
    assert jnp.all(out_pos == 0.0)
    assert jnp.array_equal(out_batch, jnp.arange(B, dtype=jnp.int32))

    print("KERNEL_OK")
</pallas_src>

<mosaic_0001>
module attributes {stable_mosaic.version = 11 : i64} {
  func.func @_global_sa_kernel(%arg0: i32, %arg1: i32, %arg2: memref<64x4xf32, #tpu.memory_space<vmem>>, %arg3: memref<64x3xf32, #tpu.memory_space<vmem>>, %arg4: memref<64x1xi32, #tpu.memory_space<vmem>>, %arg5: memref<4x128xbf16, #tpu.memory_space<vmem>>, %arg6: memref<3x128xbf16, #tpu.memory_space<vmem>>, %arg7: memref<1x128xf32, #tpu.memory_space<vmem>>, %arg8: memref<128x128xbf16, #tpu.memory_space<vmem>>, %arg9: memref<1x128xf32, #tpu.memory_space<vmem>>, %arg10: memref<1x8x128xf32, #tpu.memory_space<vmem>>) attributes {dimension_semantics = [#tpu.dimension_semantics<parallel>, #tpu.dimension_semantics<arbitrary>], iteration_bounds = array<i64: 1, 1>, scalar_prefetch = 0 : i64, scratch_operands = 0 : i64, tpu.core_type = #tpu.core_type<tc>, window_params = [{transform_indices = @transform_0, window_bounds = array<i64: 64, 4>}, {transform_indices = @transform_1, window_bounds = array<i64: 64, 3>}, {transform_indices = @transform_2, window_bounds = array<i64: 64, 1>}, {pipeline_mode = #tpu.pipeline_mode<synchronous>, transform_indices = @transform_3, window_bounds = array<i64: 4, 128>}, {pipeline_mode = #tpu.pipeline_mode<synchronous>, transform_indices = @transform_4, window_bounds = array<i64: 3, 128>}, {pipeline_mode = #tpu.pipeline_mode<synchronous>, transform_indices = @transform_5, window_bounds = array<i64: 1, 128>}, {pipeline_mode = #tpu.pipeline_mode<synchronous>, transform_indices = @transform_6, window_bounds = array<i64: 128, 128>}, {pipeline_mode = #tpu.pipeline_mode<synchronous>, transform_indices = @transform_7, window_bounds = array<i64: 1, 128>}, {transform_indices = @transform_8, window_bounds = array<i64: 1, 8, 128>}]} {
    %c0_i32 = arith.constant 0 : i32
    %0 = arith.cmpi eq, %arg1, %c0_i32 : i32
    %1 = arith.extui %0 : i1 to i32
    %c0_i32_0 = arith.constant 0 : i32
    %2 = arith.cmpi ne, %1, %c0_i32_0 : i32
    scf.if %2 {
      %cst_36 = arith.constant 0xFF800000 : f32
      %69 = vector.broadcast %cst_36 : f32 to vector<8x128xf32>
      %c0_37 = arith.constant 0 : index
      %c0_38 = arith.constant 0 : index
      %c0_39 = arith.constant 0 : index
      %70 = vector.load %arg10[%c0_37, %c0_38, %c0_39] : memref<1x8x128xf32, #tpu.memory_space<vmem>>, vector<1x8x128xf32>
      %71 = vector.shape_cast %70 : vector<1x8x128xf32> to vector<8x128xf32>
      %72 = vector.shape_cast %69 : vector<8x128xf32> to vector<1x8x128xf32>
      tpu.vector_store %arg10[%c0_37, %c0_38, %c0_39], %72 {strides = array<i32>} : memref<1x8x128xf32, #tpu.memory_space<vmem>>, vector<1x8x128xf32>,
    } else {
    }
    %c0 = arith.constant 0 : index
    %c0_1 = arith.constant 0 : index
    %3 = vector.load %arg2[%c0, %c0_1] : memref<64x4xf32, #tpu.memory_space<vmem>>, vector<64x4xf32>
    %4 = arith.truncf %3 : vector<64x4xf32> to vector<64x4xbf16>
    %c0_2 = arith.constant 0 : index
    %c0_3 = arith.constant 0 : index
    %5 = vector.load %arg5[%c0_2, %c0_3] : memref<4x128xbf16, #tpu.memory_space<vmem>>, vector<4x128xbf16>
    %cst = arith.constant dense<0.000000e+00> : vector<64x128xf32>
    %6 = tpu.matmul %4, %5, %cst {dimension_numbers = #tpu.dot_dimension_numbers<[1], [0], [0], [1], [0, 0, 1, 1], [], []>} : vector<64x4xbf16>, vector<4x128xbf16>, vector<64x128xf32> -> vector<64x128xf32>
    %c0_4 = arith.constant 0 : index
    %c0_5 = arith.constant 0 : index
    %7 = vector.load %arg3[%c0_4, %c0_5] : memref<64x3xf32, #tpu.memory_space<vmem>>, vector<64x3xf32>
    %8 = arith.truncf %7 : vector<64x3xf32> to vector<64x3xbf16>
    %c0_6 = arith.constant 0 : index
    %c0_7 = arith.constant 0 : index
    %9 = vector.load %arg6[%c0_6, %c0_7] : memref<3x128xbf16, #tpu.memory_space<vmem>>, vector<3x128xbf16>
    %cst_8 = arith.constant dense<0.000000e+00> : vector<64x128xf32>
    %10 = tpu.matmul %8, %9, %cst_8 {dimension_numbers = #tpu.dot_dimension_numbers<[1], [0], [0], [1], [0, 0, 1, 1], [], []>} : vector<64x3xbf16>, vector<3x128xbf16>, vector<64x128xf32> -> vector<64x128xf32>
    %11 = arith.addf %6, %10 : vector<64x128xf32>
    %c0_9 = arith.constant 0 : index
    %c0_10 = arith.constant 0 : index
    %12 = vector.load %arg7[%c0_9, %c0_10] : memref<1x128xf32, #tpu.memory_space<vmem>>, vector<1x128xf32>
    %13 = vector.broadcast %12 : vector<1x128xf32> to vector<64x128xf32>
    %14 = arith.addf %11, %13 : vector<64x128xf32>
    %cst_11 = arith.constant 0.000000e+00 : f32
    %15 = vector.broadcast %cst_11 : f32 to vector<64x128xf32>
    %16 = arith.maximumf %14, %15 : vector<64x128xf32>
    %17 = arith.truncf %16 : vector<64x128xf32> to vector<64x128xbf16>
    %c0_12 = arith.constant 0 : index
    %c0_13 = arith.constant 0 : index
    %18 = vector.load %arg8[%c0_12, %c0_13] : memref<128x128xbf16, #tpu.memory_space<vmem>>, vector<128x128xbf16>
    %cst_14 = arith.constant dense<0.000000e+00> : vector<64x128xf32>
    %19 = tpu.matmul %17, %18, %cst_14 {dimension_numbers = #tpu.dot_dimension_numbers<[1], [0], [0], [1], [0, 0, 1, 1], [], []>} : vector<64x128xbf16>, vector<128x128xbf16>, vector<64x128xf32> -> vector<64x128xf32>
    %c0_15 = arith.constant 0 : index
    %c0_16 = arith.constant 0 : index
    %20 = vector.load %arg9[%c0_15, %c0_16] : memref<1x128xf32, #tpu.memory_space<vmem>>, vector<1x128xf32>
    %21 = vector.broadcast %20 : vector<1x128xf32> to vector<64x128xf32>
    %22 = arith.addf %19, %21 : vector<64x128xf32>
    %cst_17 = arith.constant 0.000000e+00 : f32
    %23 = vector.broadcast %cst_17 : f32 to vector<64x128xf32>
    %24 = arith.maximumf %22, %23 : vector<64x128xf32>
    %c1_i32 = arith.constant 1 : i32
    %25 = arith.muli %arg0, %c1_i32 : i32
    %26 = arith.addi %25, %arg1 : i32
    %c0_i32_18 = arith.constant 0 : i32
    %27 = arith.minsi %26, %c0_i32_18 : i32
    %c64_i32 = arith.constant 64 : i32
    %28 = arith.muli %27, %c64_i32 : i32
    %29 = tpu.iota {dimensions = array<i32: 0>} : vector<64x1xi32>
    %30 = vector.broadcast %28 : i32 to vector<64x1xi32>
    %31 = arith.addi %30, %29 : vector<64x1xi32>
    %c64_i32_19 = arith.constant 64 : i32
    %32 = vector.broadcast %c64_i32_19 : i32 to vector<64x1xi32>
    %33 = arith.cmpi slt, %31, %32 : vector<64x1xi32>
    %c0_20 = arith.constant 0 : index
    %c0_21 = arith.constant 0 : index
    %34 = vector.load %arg4[%c0_20, %c0_21] : memref<64x1xi32, #tpu.memory_space<vmem>>, vector<64x1xi32>
    %35 = tpu.iota {dimensions = array<i32: 0>} : vector<8x128xi32>
    %c0_22 = arith.constant 0 : index
    %c0_23 = arith.constant 0 : index
    %c0_24 = arith.constant 0 : index
    %36 = vector.load %arg10[%c0_22, %c0_23, %c0_24] : memref<1x8x128xf32, #tpu.memory_space<vmem>>, vector<1x8x128xf32>
    %37 = vector.shape_cast %36 : vector<1x8x128xf32> to vector<8x128xf32>
    %c0_i32_25 = arith.constant 0 : i32
    %38 = vector.broadcast %c0_i32_25 : i32 to vector<64x1xi32>
    %39 = arith.cmpi eq, %34, %38 : vector<64x1xi32>
    %40 = arith.andi %39, %33 : vector<64x1xi1>
    %cst_26 = arith.constant 0xFF800000 : f32
    %41 = vector.shape_cast %40 : vector<64x1xi1> to vector<64x1xi1>
    %42 = vector.broadcast %41 : vector<64x1xi1> to vector<64x128xi1>
    %43 = vector.broadcast %cst_26 : f32 to vector<64x128xf32>
    %44 = arith.select %42, %24, %43 : vector<64x128xi1>, vector<64x128xf32>
    %cst_27 = arith.constant dense<0xFF800000> : vector<128xf32>
    %45 = vector.multi_reduction <maximumf>, %44, %cst_27 [0] : vector<64x128xf32> to vector<128xf32>
    %46 = vector.shape_cast %45 : vector<128xf32> to vector<1x128xf32>
    %c0_i32_28 = arith.constant 0 : i32
    %47 = vector.broadcast %c0_i32_28 : i32 to vector<8x128xi32>
    %48 = arith.cmpi eq, %35, %47 : vector<8x128xi32>
    %49 = vector.broadcast %46 : vector<1x128xf32> to vector<8x128xf32>
    %50 = arith.maximumf %37, %49 : vector<8x128xf32>
    %51 = arith.select %48, %50, %37 : vector<8x128xi1>, vector<8x128xf32>
    %c1_i32_29 = arith.constant 1 : i32
    %52 = vector.broadcast %c1_i32_29 : i32 to vector<64x1xi32>
    %53 = arith.cmpi eq, %34, %52 : vector<64x1xi32>
    %54 = arith.andi %53, %33 : vector<64x1xi1>
    %cst_30 = arith.constant 0xFF800000 : f32
    %55 = vector.shape_cast %54 : vector<64x1xi1> to vector<64x1xi1>
    %56 = vector.broadcast %55 : vector<64x1xi1> to vector<64x128xi1>
    %57 = vector.broadcast %cst_30 : f32 to vector<64x128xf32>
    %58 = arith.select %56, %24, %57 : vector<64x128xi1>, vector<64x128xf32>
    %cst_31 = arith.constant dense<0xFF800000> : vector<128xf32>
    %59 = vector.multi_reduction <maximumf>, %58, %cst_31 [0] : vector<64x128xf32> to vector<128xf32>
    %60 = vector.shape_cast %59 : vector<128xf32> to vector<1x128xf32>
    %c1_i32_32 = arith.constant 1 : i32
    %61 = vector.broadcast %c1_i32_32 : i32 to vector<8x128xi32>
    %62 = arith.cmpi eq, %35, %61 : vector<8x128xi32>
    %63 = vector.broadcast %60 : vector<1x128xf32> to vector<8x128xf32>
    %64 = arith.maximumf %51, %63 : vector<8x128xf32>
    %65 = arith.select %62, %64, %51 : vector<8x128xi1>, vector<8x128xf32>
    %c0_33 = arith.constant 0 : index
    %c0_34 = arith.constant 0 : index
    %c0_35 = arith.constant 0 : index
    %66 = vector.load %arg10[%c0_33, %c0_34, %c0_35] : memref<1x8x128xf32, #tpu.memory_space<vmem>>, vector<1x8x128xf32>
    %67 = vector.shape_cast %66 : vector<1x8x128xf32> to vector<8x128xf32>
    %68 = vector.shape_cast %65 : vector<8x128xf32> to vector<1x8x128xf32>
    tpu.vector_store %arg10[%c0_33, %c0_34, %c0_35], %68 {strides = array<i32>} : memref<1x8x128xf32, #tpu.memory_space<vmem>>, vector<1x8x128xf32>,
    return
  }
  func.func @transform_0(%arg0: i32, %arg1: i32) -> (i32, i32) {
    %c1_i32 = arith.constant 1 : i32
    %0 = arith.muli %arg0, %c1_i32 : i32
    %1 = arith.addi %0, %arg1 : i32
    %c0_i32 = arith.constant 0 : i32
    %2 = arith.minsi %1, %c0_i32 : i32
    %c0_i32_0 = arith.constant 0 : i32
    %c0_i32_1 = arith.constant 0 : i32
    return %2, %c0_i32_0 : i32, i32
  }
  func.func @transform_1(%arg0: i32, %arg1: i32) -> (i32, i32) {
    %c1_i32 = arith.constant 1 : i32
    %0 = arith.muli %arg0, %c1_i32 : i32
    %1 = arith.addi %0, %arg1 : i32
    %c0_i32 = arith.constant 0 : i32
    %2 = arith.minsi %1, %c0_i32 : i32
    %c0_i32_0 = arith.constant 0 : i32
    %c0_i32_1 = arith.constant 0 : i32
    return %2, %c0_i32_0 : i32, i32
  }
  func.func @transform_2(%arg0: i32, %arg1: i32) -> (i32, i32) {
    %c1_i32 = arith.constant 1 : i32
    %0 = arith.muli %arg0, %c1_i32 : i32
    %1 = arith.addi %0, %arg1 : i32
    %c0_i32 = arith.constant 0 : i32
    %2 = arith.minsi %1, %c0_i32 : i32
    %c0_i32_0 = arith.constant 0 : i32
    %c0_i32_1 = arith.constant 0 : i32
    return %2, %c0_i32_0 : i32, i32
  }
  func.func @transform_3(%arg0: i32, %arg1: i32) -> (i32, i32) {
    %c0_i32 = arith.constant 0 : i32
    %c0_i32_0 = arith.constant 0 : i32
    %c0_i32_1 = arith.constant 0 : i32
    return %c0_i32, %c0_i32_0 : i32, i32
  }
  func.func @transform_4(%arg0: i32, %arg1: i32) -> (i32, i32) {
    %c0_i32 = arith.constant 0 : i32
    %c0_i32_0 = arith.constant 0 : i32
    %c0_i32_1 = arith.constant 0 : i32
    return %c0_i32, %c0_i32_0 : i32, i32
  }
  func.func @transform_5(%arg0: i32, %arg1: i32) -> (i32, i32) {
    %c0_i32 = arith.constant 0 : i32
    %c0_i32_0 = arith.constant 0 : i32
    %c0_i32_1 = arith.constant 0 : i32
    return %c0_i32, %c0_i32_0 : i32, i32
  }
  func.func @transform_6(%arg0: i32, %arg1: i32) -> (i32, i32) {
    %c0_i32 = arith.constant 0 : i32
    %c0_i32_0 = arith.constant 0 : i32
    %c0_i32_1 = arith.constant 0 : i32
    return %c0_i32, %c0_i32_0 : i32, i32
  }
  func.func @transform_7(%arg0: i32, %arg1: i32) -> (i32, i32) {
    %c0_i32 = arith.constant 0 : i32
    %c0_i32_0 = arith.constant 0 : i32
    %c0_i32_1 = arith.constant 0 : i32
    return %c0_i32, %c0_i32_0 : i32, i32
  }
  func.func @transform_8(%arg0: i32, %arg1: i32) -> (i32, i32, i32) {
    %c0_i32 = arith.constant 0 : i32
    %c0_i32_0 = arith.constant 0 : i32
    %c0_i32_1 = arith.constant 0 : i32
    return %arg0, %c0_i32, %c0_i32_0 : i32, i32, i32
  }
}

</mosaic_0001>

<llo_original>
// kernel: tpu_custom_call.1
$region0: #{tpu_custom_call.1}
  #allocation0 [shape = 'u32[]', space=smem, size = 0x4, offset = 0x4, fixed_abs, tag = 'smem constant byte address 0x4 - core index']
  #allocation1 [shape = 'u32[144,128]{1,0:T(1,128)}', space=vmem, size = 0x12000, scoped, tag = 'internal scratch']
  %s0 = inlined_call_operand.vmem [shape: f32[64,4], index: 0, kind: input, shape index: {}]
  %s1 = inlined_call_operand.vmem [shape: f32[64,3], index: 1, kind: input, shape index: {}]
  %s2 = inlined_call_operand.vmem [shape: s32[64,1], index: 2, kind: input, shape index: {}]
  %s3 = inlined_call_operand.vmem [shape: bf16[4,128], index: 3, kind: input, shape index: {}]
  %s4 = inlined_call_operand.vmem [shape: bf16[3,128], index: 4, kind: input, shape index: {}]
  %s5 = inlined_call_operand.vmem [shape: f32[1,128], index: 5, kind: input, shape index: {}]
  %s6 = inlined_call_operand.vmem [shape: bf16[128,128], index: 6, kind: input, shape index: {}]
  %s7 = inlined_call_operand.vmem [shape: f32[1,128], index: 7, kind: input, shape index: {}]
  %s8 = inlined_call_operand.hbm [shape: f32[1,8,128], index: 8, kind: output, shape index: {}]
  %s9 = sld [smem:[#allocation0]]
  $region46: #{tpu_custom_call.1} parent=0
    _
  %s11 = ssub.s32 1, %s9
  %s12 = scalar_select 0, %s11, %s9
  $region1: #{tpu_custom_call.1} parent=0
    #allocation2 [shape = 'u8[4096]{0}', space=vmem, size = 0x1000, scoped, tag = 'output window, operand 0, single buffered']
    #allocation3 [shape = 's32[1]{0}', space=sflag, size = 0x4, scoped, tag = 'scoped memory for tpu_custom_call.1']
    %13 = vsyncpa [#allocation3], 0
    // Predicated region
    $region2: #{tpu_custom_call.1} parent=1 // pred_check
      _
    $region3: #{tpu_custom_call.1} parent=1 // pred_check_branch
      %15 = sbr.rel (0) target = $region5
    $region4: #{tpu_custom_call.1} parent=1 // pred_region
      %s16 = sadd.s32 0, 0
      %p17 = scmp.lt.s32.totalorder %s16, 0
      %s18 = scalar_select %p17, %s16, 0
      %s19 = smul.u32 8, %s18
      %p20 = scmp.lt.s32.totalorder %s19, 7
      %s21 = scalar_select %p20, %s19, 7
      %s22 = smul.addr %s21, 8
      %s23 = scalar_lea.vmem %s0, %s22
      %s24 = sadd.s32 0, 0
      %p25 = scmp.lt.s32.totalorder %s24, 0
      %s26 = scalar_select %p25, %s24, 0
      %s27 = smul.u32 8, %s26
    $region5: #{tpu_custom_call.1} parent=1 // pred_fallthru
      _
    // Predicated region
    $region6: #{tpu_custom_call.1} parent=1 // pred_check
      _
    $region7: #{tpu_custom_call.1} parent=1 // pred_check_branch
      %29 = sbr.rel (0) target = $region9
    $region8: #{tpu_custom_call.1} parent=1 // pred_region
      %s30 = sadd.s32 0, 0
      %p31 = scmp.lt.s32.totalorder %s30, 0
      %s32 = scalar_select %p31, %s30, 0
      %s33 = smul.u32 8, %s32
      %p34 = scmp.lt.s32.totalorder %s33, 7
      %s35 = scalar_select %p34, %s33, 7
      %s36 = smul.addr %s35, 8
      %s37 = scalar_lea.vmem %s1, %s36
      %s38 = sadd.s32 0, 0
      %p39 = scmp.lt.s32.totalorder %s38, 0
      %s40 = scalar_select %p39, %s38, 0
      %s41 = smul.u32 8, %s40
    $region9: #{tpu_custom_call.1} parent=1 // pred_fallthru
      _
    // Predicated region
    $region10: #{tpu_custom_call.1} parent=1 // pred_check
      _
    $region11: #{tpu_custom_call.1} parent=1 // pred_check_branch
      %43 = sbr.rel (0) target = $region13
    $region12: #{tpu_custom_call.1} parent=1 // pred_region
      %s44 = sadd.s32 0, 0
      %p45 = scmp.lt.s32.totalorder %s44, 0
      %s46 = scalar_select %p45, %s44, 0
      %s47 = smul.u32 8, %s46
      %p48 = scmp.lt.s32.totalorder %s47, 7
      %s49 = scalar_select %p48, %s47, 7
      %s50 = smul.addr %s49, 8
      %s51 = scalar_lea.vmem %s2, %s50
      %s52 = sadd.s32 0, 0
      %p53 = scmp.lt.s32.totalorder %s52, 0
      %s54 = scalar_select %p53, %s52, 0
      %s55 = smul.u32 8, %s54
    $region13: #{tpu_custom_call.1} parent=1 // pred_fallthru
      _
    // Predicated region
    $region14: #{tpu_custom_call.1} parent=1 // pred_check
      _
    $region15: #{tpu_custom_call.1} parent=1 // pred_check_branch
      %57 = sbr.rel (0) target = $region17
    $region16: #{tpu_custom_call.1} parent=1 // pred_region
      _
    $region17: #{tpu_custom_call.1} parent=1 // pred_fallthru
      _
    // Predicated region
    $region18: #{tpu_custom_call.1} parent=1 // pred_check
      _
    $region19: #{tpu_custom_call.1} parent=1 // pred_check_branch
      %59 = sbr.rel (0) target = $region21
    $region20: #{tpu_custom_call.1} parent=1 // pred_region
      _
    $region21: #{tpu_custom_call.1} parent=1 // pred_fallthru
      _
    // Predicated region
    $region22: #{tpu_custom_call.1} parent=1 // pred_check
      _
    $region23: #{tpu_custom_call.1} parent=1 // pred_check_branch
      %61 = sbr.rel (0) target = $region25
    $region24: #{tpu_custom_call.1} parent=1 // pred_region
      _
    $region25: #{tpu_custom_call.1} parent=1 // pred_fallthru
      _
    // Predicated region
    $region26: #{tpu_custom_call.1} parent=1 // pred_check
      _
    $region27: #{tpu_custom_call.1} parent=1 // pred_check_branch
      %63 = sbr.rel (0) target = $region29
    $region28: #{tpu_custom_call.1} parent=1 // pred_region
      _
    $region29: #{tpu_custom_call.1} parent=1 // pred_fallthru
      _
    // Predicated region
    $region30: #{tpu_custom_call.1} parent=1 // pred_check
      _
    $region31: #{tpu_custom_call.1} parent=1 // pred_check_branch
      %65 = sbr.rel (0) target = $region33
    $region32: #{tpu_custom_call.1} parent=1 // pred_region
      _
    $region33: #{tpu_custom_call.1} parent=1 // pred_fallthru
      _
    %s66 = sadd.s32 0, 0
    %p67 = scmp.lt.s32.totalorder %s66, 0
    %s68 = scalar_select %p67, %s66, 0
    %s69 = smul.u32 8, %s68
    %p70 = scmp.lt.s32.totalorder %s69, 7
    %s71 = scalar_select %p70, %s69, 7
    %s72 = smul.addr %s71, 8
    %s73 = scalar_lea.vmem %s0, %s72
    %s74 = sadd.s32 0, 0
    %p75 = scmp.lt.s32.totalorder %s74, 0
    %s76 = scalar_select %p75, %s74, 0
    %s77 = smul.u32 8, %s76
    %p78 = scmp.lt.s32.totalorder %s77, 7
    %s79 = scalar_select %p78, %s77, 7
    %s80 = smul.addr %s79, 8
    %s81 = scalar_lea.vmem %s1, %s80
    %s82 = sadd.s32 0, 0
    %p83 = scmp.lt.s32.totalorder %s82, 0
    %s84 = scalar_select %p83, %s82, 0
    %s85 = smul.u32 8, %s84
    %p86 = scmp.lt.s32.totalorder %s85, 7
    %s87 = scalar_select %p86, %s85, 7
    %s88 = smul.addr %s87, 8
    %s89 = scalar_lea.vmem %s2, %s88
    %s90 = sadd.s32 0, 0
    %p91 = scmp.lt.s32.totalorder %s90, 0
    %s92 = scalar_select %p91, %s90, 0
    %s93 = smul.u32 8, %s92
    %p94 = scmp.lt.s32.totalorder %s93, 7
    %s95 = scalar_select %p94, %s93, 7
    %s96 = smul.addr %s95, 8
    %s97 = scalar_lea.vmem %s0, %s96
    %s98 = sadd.s32 0, 0
    %p99 = scmp.lt.s32.totalorder %s98, 0
    %s100 = scalar_select %p99, %s98, 0
    %s101 = smul.u32 8, %s100
    %s102 = sadd.s32 0, 0
    %p103 = scmp.lt.s32.totalorder %s102, 0
    %s104 = scalar_select %p103, %s102, 0
    %s105 = smul.u32 8, %s104
    %p106 = scmp.lt.s32.totalorder %s105, 7
    %s107 = scalar_select %p106, %s105, 7
    %s108 = smul.addr %s107, 8
    %s109 = scalar_lea.vmem %s1, %s108
    %s110 = sadd.s32 0, 0
    %p111 = scmp.lt.s32.totalorder %s110, 0
    %s112 = scalar_select %p111, %s110, 0
    %s113 = smul.u32 8, %s112
    %s114 = sadd.s32 0, 0
    %p115 = scmp.lt.s32.totalorder %s114, 0
    %s116 = scalar_select %p115, %s114, 0
    %s117 = smul.u32 8, %s116
    %p118 = scmp.lt.s32.totalorder %s117, 7
    %s119 = scalar_select %p118, %s117, 7
    %s120 = smul.addr %s119, 8
    %s121 = scalar_lea.vmem %s2, %s120
    %s122 = sadd.s32 0, 0
    %p123 = scmp.lt.s32.totalorder %s122, 0
    %s124 = scalar_select %p123, %s122, 0
    %s125 = smul.u32 8, %s124
    %p127 = scmp.eq.s32.totalorder 0, 0
    // Predicated region
    $region34: #{tpu_custom_call.1} parent=1 // pred_check
      %p128 = pneg %p127
    $region35: #{tpu_custom_call.1} parent=1 // pred_check_branch
      %130 = sbr.rel (%p128) target = $region37
    $region36: #{tpu_custom_call.1} parent=1 // pred_region
      %131 = vst [vmem:[#allocation2] sm:$0xff] -inf
    $region37: #{tpu_custom_call.1} parent=1 // pred_fallthru
      _
    %v132 = vld [vmem:[%s97] sm:$0xff]
    %v133 = vld [vmem:[%s97 + $0x8] sm:$0xff]
    %v134 = vld [vmem:[%s97 + $0x10] sm:$0xff]
    %v135 = vld [vmem:[%s97 + $0x18] sm:$0xff]
    %v136 = vld [vmem:[%s97 + $0x20] sm:$0xff]
    %v137 = vld [vmem:[%s97 + $0x28] sm:$0xff]
    %v138 = vld [vmem:[%s97 + $0x30] sm:$0xff]
    %v139 = vld [vmem:[%s97 + $0x38] sm:$0xff]
    %v140 = vpack.c.bf16 %v133, %v132
    %v141 = vpack.c.bf16 %v135, %v134
    %v142 = vpack.c.bf16 %v137, %v136
    %v143 = vpack.c.bf16 %v139, %v138
    %v144 = vld [vmem:[%s3] sm:$0x3]
    %v145 = vld [vmem:[%s109] sm:$0xff]
    %v146 = vld [vmem:[%s109 + $0x8] sm:$0xff]
    %v147 = vld [vmem:[%s109 + $0x10] sm:$0xff]
    %v148 = vld [vmem:[%s109 + $0x18] sm:$0xff]
    %v149 = vld [vmem:[%s109 + $0x20] sm:$0xff]
    %v150 = vld [vmem:[%s109 + $0x28] sm:$0xff]
    %v151 = vld [vmem:[%s109 + $0x30] sm:$0xff]
    %v152 = vld [vmem:[%s109 + $0x38] sm:$0xff]
    %v153 = vpack.c.bf16 %v146, %v145
    %v154 = vpack.c.bf16 %v148, %v147
    %v155 = vpack.c.bf16 %v150, %v149
    %v156 = vpack.c.bf16 %v152, %v151
    %v157 = vld [vmem:[%s4] sm:$0x3]
    %vm158 = vcmask 23552
    %v160 = vsel %vm158, %v153, 0
    %v163 = vsel %vm158, %v154, 0
    %v166 = vsel %vm158, %v155, 0
    %v169 = vsel %vm158, %v156, 0
    %vm171 = vcmask 1040384
    %vm172 = vcmask 1041408
    %v173 = vsel %vm171, 4294967295, 65535
    %v174 = vsel %vm172, %v173, 0
    %v176 = vand.u32 %v157, %v174
    %178 = vmatprep.subr.bf16.mxu0 0
    %179 = vmatpush1.bf16.msra.mxu0 0
    %180 = vmatprep.subr.bf16.mxu0 0
    %181 = vmatpush1.bf16.msra.mxu0 0
    %182 = vmatprep.subr.bf16.mxu0 0
    %183 = vmatpush1.bf16.msra.mxu0 0
    %184 = vmatprep.subr.bf16.mxu0 0
    %185 = vmatpush1.bf16.msra.mxu0 0
    %186 = vmatprep.subr.bf16.mxu0 0
    %187 = vmatpush1.bf16.msra.mxu0 0
    %188 = vmatprep.subr.bf16.mxu0 0
    %189 = vmatpush1.bf16.msra.mxu0 0
    %190 = vmatprep.subr.bf16.mxu0 0
    %191 = vmatpush1.bf16.msra.mxu0 0
    %192 = vmatprep.subr.bf16.mxu0 0
    %193 = vmatpush1.bf16.msra.mxu0 %v176
    %194 = vmatprep.subr.bf16.mxu0 0
    %195 = vmatpush2.bf16.msra.mxu0 0
    %196 = vmatprep.subr.bf16.mxu0 0
    %197 = vmatpush2.bf16.msra.mxu0 0
    %198 = vmatprep.subr.bf16.mxu0 0
    %199 = vmatpush2.bf16.msra.mxu0 0
    %200 = vmatprep.subr.bf16.mxu0 0
    %201 = vmatpush2.bf16.msra.mxu0 0
    %202 = vmatprep.subr.bf16.mxu0 0
    %203 = vmatpush2.bf16.msra.mxu0 0
    %204 = vmatprep.subr.bf16.mxu0 0
    %205 = vmatpush2.bf16.msra.mxu0 0
    %206 = vmatprep.subr.bf16.mxu0 0
    %207 = vmatpush2.bf16.msra.mxu0 0
    %208 = vmatprep.subr.bf16.mxu0 0
    %209 = vmatpush2.bf16.msra.mxu0 0
    %210 = vmatprep.mubr.bf16.mxu0 0
    %211 = vmatmul.mubr.bf16.gmra.mxu0 %v160
    %v212 = vpop.f32.mrf.mxu0
    %v213 = vadd.f32 0.0, %v212
    %v214 = vpop.f32.mrf.mxu0
    %v215 = vpop.f32.mrf.mxu0
    %v216 = vadd.f32 0.0, %v215
    %v217 = vpop.f32.mrf.mxu0
    %218 = vmatprep.mubr.bf16.mxu0 0
    %219 = vmatmul.mubr.bf16.gmra.mxu0 %v163
    %v220 = vpop.f32.mrf.mxu0
    %v221 = vadd.f32 0.0, %v220
    %v222 = vpop.f32.mrf.mxu0
    %v223 = vpop.f32.mrf.mxu0
    %v224 = vadd.f32 0.0, %v223
    %v225 = vpop.f32.mrf.mxu0
    %226 = vmatprep.mubr.bf16.mxu0 0
    %227 = vmatmul.mubr.bf16.gmra.mxu0 %v166
    %v228 = vpop.f32.mrf.mxu0
    %v229 = vadd.f32 0.0, %v228
    %v230 = vpop.f32.mrf.mxu0
    %v231 = vpop.f32.mrf.mxu0
    %v232 = vadd.f32 0.0, %v231
    %v233 = vpop.f32.mrf.mxu0
    %234 = vmatprep.mubr.bf16.mxu0 0
    %235 = vmatmul.mubr.bf16.gmra.mxu0 %v169
    %v236 = vpop.f32.mrf.mxu0
    %v237 = vadd.f32 0.0, %v236
    %v238 = vpop.f32.mrf.mxu0
    %v239 = vpop.f32.mrf.mxu0
    %v240 = vadd.f32 0.0, %v239
    %v241 = vpop.f32.mrf.mxu0
    %242 = vdwg.mxu0
    %vm243 = vcmask 31744
    %v245 = vsel %vm243, %v140, 0
    %v248 = vsel %vm243, %v141, 0
    %v251 = vsel %vm243, %v142, 0
    %v254 = vsel %vm243, %v143, 0
    %v257 = vsel %vm172, %v144, 0
    %259 = vmatprep.subr.bf16.mxu0 0
    %260 = vmatpush1.bf16.msra.mxu0 0
    %261 = vmatprep.subr.bf16.mxu0 0
    %262 = vmatpush1.bf16.msra.mxu0 0
    %263 = vmatprep.subr.bf16.mxu0 0
    %264 = vmatpush1.bf16.msra.mxu0 0
    %265 = vmatprep.subr.bf16.mxu0 0
    %266 = vmatpush1.bf16.msra.mxu0 0
    %267 = vmatprep.subr.bf16.mxu0 0
    %268 = vmatpush1.bf16.msra.mxu0 0
    %269 = vmatprep.subr.bf16.mxu0 0
    %270 = vmatpush1.bf16.msra.mxu0 0
    %271 = vmatprep.subr.bf16.mxu0 0
    %272 = vmatpush1.bf16.msra.mxu0 0
    %273 = vmatprep.subr.bf16.mxu0 0
    %274 = vmatpush1.bf16.msra.mxu0 %v257
    %275 = vmatprep.subr.bf16.mxu0 0
    %276 = vmatpush2.bf16.msra.mxu0 0
    %277 = vmatprep.subr.bf16.mxu0 0
    %278 = vmatpush2.bf16.msra.mxu0 0
    %279 = vmatprep.subr.bf16.mxu0 0
    %280 = vmatpush2.bf16.msra.mxu0 0
    %281 = vmatprep.subr.bf16.mxu0 0
    %282 = vmatpush2.bf16.msra.mxu0 0
    %283 = vmatprep.subr.bf16.mxu0 0
    %284 = vmatpush2.bf16.msra.mxu0 0
    %285 = vmatprep.subr.bf16.mxu0 0
    %286 = vmatpush2.bf16.msra.mxu0 0
    %287 = vmatprep.subr.bf16.mxu0 0
    %288 = vmatpush2.bf16.msra.mxu0 0
    %289 = vmatprep.subr.bf16.mxu0 0
    %290 = vmatpush2.bf16.msra.mxu0 0
    %291 = vmatprep.mubr.bf16.mxu0 0
    %292 = vmatmul.mubr.bf16.gmra.mxu0 %v245
    %v293 = vpop.f32.mrf.mxu0
    %v294 = vadd.f32 %v213, %v293
    %v295 = vpop.f32.mrf.mxu0
    %v296 = vpop.f32.mrf.mxu0
    %v297 = vadd.f32 %v216, %v296
    %v298 = vpop.f32.mrf.mxu0
    %299 = vmatprep.mubr.bf16.mxu0 0
    %300 = vmatmul.mubr.bf16.gmra.mxu0 %v248
    %v301 = vpop.f32.mrf.mxu0
    %v302 = vadd.f32 %v221, %v301
    %v303 = vpop.f32.mrf.mxu0
    %v304 = vpop.f32.mrf.mxu0
    %v305 = vadd.f32 %v224, %v304
    %v306 = vpop.f32.mrf.mxu0
    %307 = vmatprep.mubr.bf16.mxu0 0
    %308 = vmatmul.mubr.bf16.gmra.mxu0 %v251
    %v309 = vpop.f32.mrf.mxu0
    %v310 = vadd.f32 %v229, %v309
    %v311 = vpop.f32.mrf.mxu0
    %v312 = vpop.f32.mrf.mxu0
    %v313 = vadd.f32 %v232, %v312
    %v314 = vpop.f32.mrf.mxu0
    %315 = vmatprep.mubr.bf16.mxu0 0
    %316 = vmatmul.mubr.bf16.gmra.mxu0 %v254
    %v317 = vpop.f32.mrf.mxu0
    %v318 = vadd.f32 %v237, %v317
    %v319 = vpop.f32.mrf.mxu0
    %v320 = vpop.f32.mrf.mxu0
    %v321 = vadd.f32 %v240, %v320
    %v322 = vpop.f32.mrf.mxu0
    %323 = vdwg.mxu0
    %v324 = vld [vmem:[%s5] sm:$0x1]
    %v326 = vlaneseq
    %v327 = vshrl.u32 %v326, 7
    %v328 = vsub.s32 0, %v327
    %v329 = vrot.slane %v324, %v328
    %v331 = vadd.f32 %v294, %v329
    %v332 = vadd.f32 %v297, %v329
    %v333 = vadd.f32 %v302, %v329
    %v334 = vadd.f32 %v305, %v329
    %v335 = vadd.f32 %v310, %v329
    %v336 = vadd.f32 %v313, %v329
    %v337 = vadd.f32 %v318, %v329
    %v338 = vadd.f32 %v321, %v329
    %v339 = vmax.f32 %v331, 0.0
    %v340 = vmax.f32 %v332, 0.0
    %v341 = vmax.f32 %v333, 0.0
    %v342 = vmax.f32 %v334, 0.0
    %v343 = vmax.f32 %v335, 0.0
    %v344 = vmax.f32 %v336, 0.0
    %v345 = vmax.f32 %v337, 0.0
    %v346 = vmax.f32 %v338, 0.0
    %v347 = vpack.c.bf16 %v340, %v339
    %v348 = vpack.c.bf16 %v342, %v341
    %v349 = vpack.c.bf16 %v344, %v343
    %v350 = vpack.c.bf16 %v346, %v345
    %v351 = vld [vmem:[%s6] sm:$0xf]
    %v352 = vld [vmem:[%s6 + $0x4] sm:$0xf]
    %v353 = vld [vmem:[%s6 + $0x8] sm:$0xf]
    %v354 = vld [vmem:[%s6 + $0xc] sm:$0xf]
    %v355 = vld [vmem:[%s6 + $0x10] sm:$0xf]
    %v356 = vld [vmem:[%s6 + $0x14] sm:$0xf]
    %v357 = vld [vmem:[%s6 + $0x18] sm:$0xf]
    %v358 = vld [vmem:[%s6 + $0x1c] sm:$0xf]
    %v359 = vld [vmem:[%s6 + $0x20] sm:$0xf]
    %v360 = vld [vmem:[%s6 + $0x24] sm:$0xf]
    %v361 = vld [vmem:[%s6 + $0x28] sm:$0xf]
    %v362 = vld [vmem:[%s6 + $0x2c] sm:$0xf]
    %v363 = vld [vmem:[%s6 + $0x30] sm:$0xf]
    %v364 = vld [vmem:[%s6 + $0x34] sm:$0xf]
    %v365 = vld [vmem:[%s6 + $0x38] sm:$0xf]
    %v366 = vld [vmem:[%s6 + $0x3c] sm:$0xf]
    %v367 = vld [vmem:[%s7] sm:$0x1]
    %v369 = vlaneseq
    %v370 = vshrl.u32 %v369, 7
    %v371 = vsub.s32 0, %v370
    %v372 = vrot.slane %v367, %v371
    %v390 = vunpack.c.l.b16 %v351
    %v391 = vunpack.c.l.b16 %v352
    %v392 = vunpack.c.l.b16 %v353
    %v393 = vunpack.c.l.b16 %v354
    %v394 = vunpack.c.l.b16 %v355
    %v395 = vunpack.c.l.b16 %v356
    %v396 = vunpack.c.l.b16 %v357
    %v397 = vunpack.c.l.b16 %v358
    %v398 = vunpack.c.l.b16 %v359
    %v399 = vunpack.c.l.b16 %v360
    %v400 = vunpack.c.l.b16 %v361
    %v401 = vunpack.c.l.b16 %v362
    %v402 = vunpack.c.l.b16 %v363
    %v403 = vunpack.c.l.b16 %v364
    %v404 = vunpack.c.l.b16 %v365
    %v405 = vunpack.c.l.b16 %v366
    %v406 = vpack.c.b16 %v391, %v390
    %v407 = vpack.c.b16 %v393, %v392
    %v408 = vpack.c.b16 %v395, %v394
    %v409 = vpack.c.b16 %v397, %v396
    %v410 = vpack.c.b16 %v399, %v398
    %v411 = vpack.c.b16 %v401, %v400
    %v412 = vpack.c.b16 %v403, %v402
    %v413 = vpack.c.b16 %v405, %v404
    %422 = vmatprep.subr.bf16.mxu0 0
    %423 = vmatpush1.bf16.msra.mxu0 %v413
    %424 = vmatprep.subr.bf16.mxu0 0
    %425 = vmatpush1.bf16.msra.mxu0 %v412
    %426 = vmatprep.subr.bf16.mxu0 0
    %427 = vmatpush1.bf16.msra.mxu0 %v411
    %428 = vmatprep.subr.bf16.mxu0 0
    %429 = vmatpush1.bf16.msra.mxu0 %v410
    %430 = vmatprep.subr.bf16.mxu0 0
    %431 = vmatpush1.bf16.msra.mxu0 %v409
    %432 = vmatprep.subr.bf16.mxu0 0
    %433 = vmatpush1.bf16.msra.mxu0 %v408
    %434 = vmatprep.subr.bf16.mxu0 0
    %435 = vmatpush1.bf16.msra.mxu0 %v407
    %436 = vmatprep.subr.bf16.mxu0 0
    %437 = vmatpush1.bf16.msra.mxu0 %v406
    %438 = vmatprep.subr.bf16.mxu0 0
    %439 = vmatpush2.bf16.msra.mxu0 0
    %440 = vmatprep.subr.bf16.mxu0 0
    %441 = vmatpush2.bf16.msra.mxu0 0
    %442 = vmatprep.subr.bf16.mxu0 0
    %443 = vmatpush2.bf16.msra.mxu0 0
    %444 = vmatprep.subr.bf16.mxu0 0
    %445 = vmatpush2.bf16.msra.mxu0 0
    %446 = vmatprep.subr.bf16.mxu0 0
    %447 = vmatpush2.bf16.msra.mxu0 0
    %448 = vmatprep.subr.bf16.mxu0 0
    %449 = vmatpush2.bf16.msra.mxu0 0
    %450 = vmatprep.subr.bf16.mxu0 0
    %451 = vmatpush2.bf16.msra.mxu0 0
    %452 = vmatprep.subr.bf16.mxu0 0
    %453 = vmatpush2.bf16.msra.mxu0 0
    %454 = vmatprep.mubr.bf16.mxu0 0
    %455 = vmatmul.mubr.bf16.gmra.mxu0 %v347
    %v456 = vpop.f32.mrf.mxu0
    %v457 = vadd.f32 %v372, %v456
    %v458 = vpop.f32.mrf.mxu0
    %v459 = vpop.f32.mrf.mxu0
    %v460 = vadd.f32 %v372, %v459
    %v461 = vpop.f32.mrf.mxu0
    %462 = vmatprep.mubr.bf16.mxu0 0
    %463 = vmatmul.mubr.bf16.gmra.mxu0 %v348
    %v464 = vpop.f32.mrf.mxu0
    %v465 = vadd.f32 %v372, %v464
    %v466 = vpop.f32.mrf.mxu0
    %v467 = vpop.f32.mrf.mxu0
    %v468 = vadd.f32 %v372, %v467
    %v469 = vpop.f32.mrf.mxu0
    %470 = vmatprep.mubr.bf16.mxu0 0
    %471 = vmatmul.mubr.bf16.gmra.mxu0 %v349
    %v472 = vpop.f32.mrf.mxu0
    %v473 = vadd.f32 %v372, %v472
    %v474 = vpop.f32.mrf.mxu0
    %v475 = vpop.f32.mrf.mxu0
    %v476 = vadd.f32 %v372, %v475
    %v477 = vpop.f32.mrf.mxu0
    %478 = vmatprep.mubr.bf16.mxu0 0
    %479 = vmatmul.mubr.bf16.gmra.mxu0 %v350
    %v480 = vpop.f32.mrf.mxu0
    %v481 = vadd.f32 %v372, %v480
    %v482 = vpop.f32.mrf.mxu0
    %v483 = vpop.f32.mrf.mxu0
    %v484 = vadd.f32 %v372, %v483
    %v485 = vpop.f32.mrf.mxu0
    %486 = vdwg.mxu0
    %v487 = vmax.f32 %v457, 0.0
    %v488 = vmax.f32 %v460, 0.0
    %v489 = vmax.f32 %v465, 0.0
    %v490 = vmax.f32 %v468, 0.0
    %v491 = vmax.f32 %v473, 0.0
    %v492 = vmax.f32 %v476, 0.0
    %v493 = vmax.f32 %v481, 0.0
    %v494 = vmax.f32 %v484, 0.0
    %s495 = sadd.s32 0, 0
    %p496 = scmp.lt.s32.totalorder %s495, 0
    %s497 = scalar_select %p496, %s495, 0
    %s498 = smul.u32 %s497, 64
    %v499 = vlaneseq
    %v500 = vshrl.u32 %v499, 7
    %v501 = vadd.s32 %v500, 8
    %v502 = vadd.s32 %v500, 16
    %v503 = vadd.s32 %v500, 24
    %v504 = vadd.s32 %v500, 32
    %v505 = vadd.s32 %v500, 40
    %v506 = vadd.s32 %v500, 48
    %v507 = vadd.s32 %v500, 56
    %v508 = vstv %s498
    %v509 = vadd.s32 %v508, %v500
    %v510 = vadd.s32 %v508, %v501
    %v511 = vadd.s32 %v508, %v502
    %v512 = vadd.s32 %v508, %v503
    %v513 = vadd.s32 %v508, %v504
    %v514 = vadd.s32 %v508, %v505
    %v515 = vadd.s32 %v508, %v506
    %v516 = vadd.s32 %v508, %v507
    %vm517 = vcmp.lt.s32.totalorder %v509, 64
    %vm518 = vcmp.lt.s32.totalorder %v510, 64
    %vm519 = vcmp.lt.s32.totalorder %v511, 64
    %vm520 = vcmp.lt.s32.totalorder %v512, 64
    %vm521 = vcmp.lt.s32.totalorder %v513, 64
    %vm522 = vcmp.lt.s32.totalorder %v514, 64
    %vm523 = vcmp.lt.s32.totalorder %v515, 64
    %vm524 = vcmp.lt.s32.totalorder %v516, 64
    %v525 = vld [vmem:[%s121] sm:$0xff]
    %v526 = vld [vmem:[%s121 + $0x8] sm:$0xff]
    %v527 = vld [vmem:[%s121 + $0x10] sm:$0xff]
    %v528 = vld [vmem:[%s121 + $0x18] sm:$0xff]
    %v529 = vld [vmem:[%s121 + $0x20] sm:$0xff]
    %v530 = vld [vmem:[%s121 + $0x28] sm:$0xff]
    %v531 = vld [vmem:[%s121 + $0x30] sm:$0xff]
    %v532 = vld [vmem:[%s121 + $0x38] sm:$0xff]
    %v533 = vld [vmem:[#allocation2] sm:$0xff]
    %vm534 = vcmp.eq.s32.totalorder %v525, 0
    %vm535 = vcmp.eq.s32.totalorder %v526, 0
    %vm536 = vcmp.eq.s32.totalorder %v527, 0
    %vm537 = vcmp.eq.s32.totalorder %v528, 0
    %vm538 = vcmp.eq.s32.totalorder %v529, 0
    %vm539 = vcmp.eq.s32.totalorder %v530, 0
    %vm540 = vcmp.eq.s32.totalorder %v531, 0
    %vm541 = vcmp.eq.s32.totalorder %v532, 0
    %vm542 = vmand %vm534, %vm517
    %vm543 = vmand %vm535, %vm518
    %vm544 = vmand %vm536, %vm519
    %vm545 = vmand %vm537, %vm520
    %vm546 = vmand %vm538, %vm521
    %vm547 = vmand %vm539, %vm522
    %vm548 = vmand %vm540, %vm523
    %vm549 = vmand %vm541, %vm524
    %v550 = vsel %vm542, 1, 0
    %v551 = vsel %vm543, 1, 0
    %v552 = vsel %vm544, 1, 0
    %v553 = vsel %vm545, 1, 0
    %v554 = vsel %vm546, 1, 0
    %v555 = vsel %vm547, 1, 0
    %v556 = vsel %vm548, 1, 0
    %v557 = vsel %vm549, 1, 0
    %558 = vset.pattern.permute.xlu0 0
    %559 = vperm.xlu0 %558, %v550
    %v560 = vpop.permute.xlu0 %559
    %561 = vset.pattern.permute.xlu0 0
    %562 = vperm.xlu0 %561, %v551
    %v563 = vpop.permute.xlu0 %562
    %564 = vset.pattern.permute.xlu0 0
    %565 = vperm.xlu0 %564, %v552
    %v566 = vpop.permute.xlu0 %565
    %567 = vset.pattern.permute.xlu0 0
    %568 = vperm.xlu0 %567, %v553
    %v569 = vpop.permute.xlu0 %568
    %570 = vset.pattern.permute.xlu0 0
    %571 = vperm.xlu0 %570, %v554
    %v572 = vpop.permute.xlu0 %571
    %573 = vset.pattern.permute.xlu0 0
    %574 = vperm.xlu0 %573, %v555
    %v575 = vpop.permute.xlu0 %574
    %576 = vset.pattern.permute.xlu0 0
    %577 = vperm.xlu0 %576, %v556
    %v578 = vpop.permute.xlu0 %577
    %579 = vset.pattern.permute.xlu0 0
    %580 = vperm.xlu0 %579, %v557
    %v581 = vpop.permute.xlu0 %580
    %vm582 = vcmp.eq.s32.totalorder %v560, 1
    %vm583 = vcmp.eq.s32.totalorder %v563, 1
    %vm584 = vcmp.eq.s32.totalorder %v566, 1
    %vm585 = vcmp.eq.s32.totalorder %v569, 1
    %vm586 = vcmp.eq.s32.totalorder %v572, 1
    %vm587 = vcmp.eq.s32.totalorder %v575, 1
    %vm588 = vcmp.eq.s32.totalorder %v578, 1
    %vm589 = vcmp.eq.s32.totalorder %v581, 1
    %v590 = vsel %vm582, %v487, -inf
    %v591 = vsel %vm583, %v488, -inf
    %v592 = vsel %vm584, %v489, -inf
    %v593 = vsel %vm585, %v490, -inf
    %v594 = vsel %vm586, %v491, -inf
    %v595 = vsel %vm587, %v492, -inf
    %v596 = vsel %vm588, %v493, -inf
    %v597 = vsel %vm589, %v494, -inf
    %v598 = vmax.f32 %v590, %v594
    %v599 = vmax.f32 %v591, %v595
    %v600 = vmax.f32 %v592, %v596
    %v601 = vmax.f32 %v593, %v597
    %v602 = vmax.f32 %v598, %v599
    %v603 = vmax.f32 %v600, %v601
    %v604 = vmax.f32 %v602, %v603
    %v605 = vrot.slane %v604, 4
    %v606 = vmax.f32 %v604, %v605
    %v607 = vrot.slane %v606, 2
    %v608 = vmax.f32 %v606, %v607
    %v609 = vrot.slane %v608, 1
    %v610 = vmax.f32 %v608, %v609
    %vm611 = vcmp.eq.s32.totalorder %v500, 0
    %v612 = vmax.f32 %v533, %v610
    %v613 = vsel %vm611, %v612, %v533
    %vm614 = vcmp.eq.s32.totalorder %v525, 1
    %vm615 = vcmp.eq.s32.totalorder %v526, 1
    %vm616 = vcmp.eq.s32.totalorder %v527, 1
    %vm617 = vcmp.eq.s32.totalorder %v528, 1
    %vm618 = vcmp.eq.s32.totalorder %v529, 1
    %vm619 = vcmp.eq.s32.totalorder %v530, 1
    %vm620 = vcmp.eq.s32.totalorder %v531, 1
    %vm621 = vcmp.eq.s32.totalorder %v532, 1
    %vm622 = vmand %vm614, %vm517
    %vm623 = vmand %vm615, %vm518
    %vm624 = vmand %vm616, %vm519
    %vm625 = vmand %vm617, %vm520
    %vm626 = vmand %vm618, %vm521
    %vm627 = vmand %vm619, %vm522
    %vm628 = vmand %vm620, %vm523
    %vm629 = vmand %vm621, %vm524
    %v630 = vsel %vm622, 1, 0
    %v631 = vsel %vm623, 1, 0
    %v632 = vsel %vm624, 1, 0
    %v633 = vsel %vm625, 1, 0
    %v634 = vsel %vm626, 1, 0
    %v635 = vsel %vm627, 1, 0
    %v636 = vsel %vm628, 1, 0
    %v637 = vsel %vm629, 1, 0
    %638 = vset.pattern.permute.xlu0 0
    %639 = vperm.xlu0 %638, %v630
    %v640 = vpop.permute.xlu0 %639
    %641 = vset.pattern.permute.xlu0 0
    %642 = vperm.xlu0 %641, %v631
    %v643 = vpop.permute.xlu0 %642
    %644 = vset.pattern.permute.xlu0 0
    %645 = vperm.xlu0 %644, %v632
    %v646 = vpop.permute.xlu0 %645
    %647 = vset.pattern.permute.xlu0 0
    %648 = vperm.xlu0 %647, %v633
    %v649 = vpop.permute.xlu0 %648
    %650 = vset.pattern.permute.xlu0 0
    %651 = vperm.xlu0 %650, %v634
    %v652 = vpop.permute.xlu0 %651
    %653 = vset.pattern.permute.xlu0 0
    %654 = vperm.xlu0 %653, %v635
    %v655 = vpop.permute.xlu0 %654
    %656 = vset.pattern.permute.xlu0 0
    %657 = vperm.xlu0 %656, %v636
    %v658 = vpop.permute.xlu0 %657
    %659 = vset.pattern.permute.xlu0 0
    %660 = vperm.xlu0 %659, %v637
    %v661 = vpop.permute.xlu0 %660
    %vm662 = vcmp.eq.s32.totalorder %v640, 1
    %vm663 = vcmp.eq.s32.totalorder %v643, 1
    %vm664 = vcmp.eq.s32.totalorder %v646, 1
    %vm665 = vcmp.eq.s32.totalorder %v649, 1
    %vm666 = vcmp.eq.s32.totalorder %v652, 1
    %vm667 = vcmp.eq.s32.totalorder %v655, 1
    %vm668 = vcmp.eq.s32.totalorder %v658, 1
    %vm669 = vcmp.eq.s32.totalorder %v661, 1
    %v670 = vsel %vm662, %v487, -inf
    %v671 = vsel %vm663, %v488, -inf
    %v672 = vsel %vm664, %v489, -inf
    %v673 = vsel %vm665, %v490, -inf
    %v674 = vsel %vm666, %v491, -inf
    %v675 = vsel %vm667, %v492, -inf
    %v676 = vsel %vm668, %v493, -inf
    %v677 = vsel %vm669, %v494, -inf
    %v678 = vmax.f32 %v670, %v674
    %v679 = vmax.f32 %v671, %v675
    %v680 = vmax.f32 %v672, %v676
    %v681 = vmax.f32 %v673, %v677
    %v682 = vmax.f32 %v678, %v679
    %v683 = vmax.f32 %v680, %v681
    %v684 = vmax.f32 %v682, %v683
    %v685 = vrot.slane %v684, 4
    %v686 = vmax.f32 %v684, %v685
    %v687 = vrot.slane %v686, 2
    %v688 = vmax.f32 %v686, %v687
    %v689 = vrot.slane %v688, 1
    %v690 = vmax.f32 %v688, %v689
    %vm691 = vcmp.eq.s32.totalorder %v500, 1
    %v692 = vmax.f32 %v613, %v690
    %v693 = vsel %vm691, %v692, %v613
    %694 = vst [vmem:[#allocation2] sm:$0xff] %v693
    // Predicated region
    $region38: #{tpu_custom_call.1} parent=1 // pred_check
      _
    $region39: #{tpu_custom_call.1} parent=1 // pred_check_branch
      %696 = sbr.rel (0) target = $region41
    $region40: #{tpu_custom_call.1} parent=1 // pred_region
      %s698 = ssub.s32 128, 128
      %699 = vsyncadd [#allocation3], %s698
      %s701 = sshll.u32 [#allocation2], 4
      %s702 = int_to_ptr.vmem [resolvable:$true] %s701
      %704 = dma.vmem_to_hbm [thread:$0]  %s702, 128, %s8, [#allocation3]
    $region41: #{tpu_custom_call.1} parent=1 // pred_fallthru
      _
    // Predicated region
    $region42: #{tpu_custom_call.1} parent=1 // pred_check
      _
    $region43: #{tpu_custom_call.1} parent=1 // pred_check_branch
      %706 = sbr.rel (0) target = $region45
    $region44: #{tpu_custom_call.1} parent=1 // pred_region
      %707 = dma.done [#allocation3], 128
    $region45: #{tpu_custom_call.1} parent=1 // pred_fallthru
      _
    %708 = vsyncpa [#allocation3], 1

</llo_original>
